<compile_context>
chip_gen: v5e
topology: v5e:2x2
jax: 0.10.0
libtpu: 0.0.40
codegen_flags: <defaults>
</compile_context>

<pallas_src>
import math

import jax
import jax.numpy as jnp
from jax.experimental import pallas as pl
from jax.experimental.pallas import tpu as pltpu


def _logistic_kernel(x_ref, w_ref, b_ref, o_ref):
    # x_ref: (TM, 784) f32 | w_ref: (784, 10) f32 | b_ref: (1, 10) f32 | o_ref: (TM, 10) f32
    xw = jnp.dot(x_ref[...], w_ref[...], preferred_element_type=jnp.float32)
    o_ref[...] = (xw + b_ref[...]).astype(o_ref.dtype)


def _round_up(v, m):
    return ((v + m - 1) // m) * m


def _tile_rows_and_vmem():
    """Generation-aware batch tile, scoped-VMEM limit, and even-grid flag (f32 X)."""
    kind = jax.devices()[0].device_kind.lower()
    if "v7" in kind:
        # 64 MiB VMEM/TC, 3.2 TB/s HBM, 2 TCs: explicit limit, keep grid even.
        return 4096, 44 << 20, True
    if "v6" in kind:
        # 128 MiB VMEM: 2 x ~29.4 MiB lane-padded f32 X tiles + outputs fit in 96 MiB.
        return 8192, 96 << 20, False
    if "v5" in kind:
        # ~0.82 TB/s HBM: 4096-row steps keep per-step overhead < ~3%.
        return 4096, 64 << 20, False
    # Unknown generation: stay conservative with the default scoped limit.
    return 2048, None, False


def mnist_logistic_forward(x, weight, bias, *, tile_rows=None):
    """x: (N, 784) f32, weight: (10, 784) f32, bias: (10,) f32 -> (N, 10) f32 logits.

    tile_rows (optional) should be a multiple of 16 (or >= N); it is rounded up.
    """
    n, d = x.shape
    k = weight.shape[0]

    tm_target, vmem_limit, even_grid = _tile_rows_and_vmem()
    tm = tile_rows if tile_rows is not None else tm_target
    tm = max(8, min(tm, n))
    if tm < n:
        # Multiple of 16 for good sublane packing (or collapse to the full dim).
        tm = min(_round_up(tm, 16), n)
    if even_grid and tm < n:
        # v7x megacore: make the number of batch tiles even so both TCs get equal work.
        steps = -(-n // tm)
        if steps % 2:
            tm = min(_round_up(-(-n // (steps + 1)), 16), n)

    # One-time wrapper transpose (15.7 KB) so the kernel RHS is already MXU-friendly.
    w_t = weight.astype(jnp.float32).T            # (784, 10)
    b2d = bias.reshape(1, k).astype(jnp.float32)  # (1, 10)
    x_f = x.astype(jnp.float32)

    itemsize = 4
    cost = pl.CostEstimate(
        flops=2 * n * d * k,
        transcendentals=0,
        bytes_accessed=(n * d + d * k + k + n * k) * itemsize,
    )

    return pl.pallas_call(
        _logistic_kernel,
        out_shape=jax.ShapeDtypeStruct((n, k), jnp.float32),
        grid_spec=pltpu.PrefetchScalarGridSpec(
            num_scalar_prefetch=0,
            grid=(pl.cdiv(n, tm),),
            in_specs=[
                pl.BlockSpec((tm, d), lambda i: (i, 0)),   # streamed X tiles (f32)
                pl.BlockSpec((d, k), lambda i: (0, 0)),    # W^T resident across grid
                pl.BlockSpec((1, k), lambda i: (0, 0)),    # bias resident across grid
            ],
            out_specs=pl.BlockSpec((tm, k), lambda i: (i, 0)),
        ),
        compiler_params=pltpu.CompilerParams(
            dimension_semantics=("parallel",),   # rows independent; megacore-shardable
            vmem_limit_bytes=vmem_limit,
        ),
        cost_estimate=cost,
    )(x_f, w_t, b2d)


if __name__ == "__main__":
    key = jax.random.PRNGKey(0)
    k_x, k_w, k_b = jax.random.split(key, 3)

    N, D, K = 32, 784, 10

    # nn.Linear(784, 10)-style init: U(-1/sqrt(in_features), 1/sqrt(in_features)).
    bound = 1.0 / math.sqrt(D)
    weight = jax.random.uniform(k_w, (K, D), jnp.float32, -bound, bound)
    bias = jax.random.uniform(k_b, (K,), jnp.float32, -bound, bound)
    x = jax.random.normal(k_x, (N, D), jnp.float32)

    # Exercise the multi-tile grid path (2 batch tiles of 16 rows) and the auto path.
    out_tiled = jax.block_until_ready(mnist_logistic_forward(x, weight, bias, tile_rows=16))
    out_auto = jax.block_until_ready(mnist_logistic_forward(x, weight, bias))

    ref = x @ weight.T + bias
    assert out_tiled.shape == (N, K)
    assert out_auto.shape == (N, K)
    # f32 streaming + f32 MXU accumulation: tight tolerances.
    assert jnp.allclose(out_tiled, ref, atol=1e-2, rtol=1e-2)
    assert jnp.allclose(out_auto, ref, atol=1e-2, rtol=1e-2)

    print("KERNEL_OK")
</pallas_src>

<mosaic_0001>
module attributes {stable_mosaic.version = 11 : i64} {
  func.func @_logistic_kernel(%arg0: i32, %arg1: memref<16x784xf32, #tpu.memory_space<vmem>>, %arg2: memref<784x10xf32, #tpu.memory_space<vmem>>, %arg3: memref<1x10xf32, #tpu.memory_space<vmem>>, %arg4: memref<16x10xf32, #tpu.memory_space<vmem>>) attributes {dimension_semantics = [#tpu.dimension_semantics<parallel>], iteration_bounds = array<i64: 2>, scalar_prefetch = 0 : i64, scratch_operands = 0 : i64, tpu.core_type = #tpu.core_type<tc>, window_params = [{transform_indices = @transform_0, window_bounds = array<i64: 16, 784>}, {pipeline_mode = #tpu.pipeline_mode<synchronous>, transform_indices = @transform_1, window_bounds = array<i64: 784, 10>}, {pipeline_mode = #tpu.pipeline_mode<synchronous>, transform_indices = @transform_2, window_bounds = array<i64: 1, 10>}, {transform_indices = @transform_3, window_bounds = array<i64: 16, 10>}]} {
    %c0 = arith.constant 0 : index
    %c0_0 = arith.constant 0 : index
    %0 = vector.load %arg1[%c0, %c0_0] : memref<16x784xf32, #tpu.memory_space<vmem>>, vector<16x784xf32>
    %c0_1 = arith.constant 0 : index
    %c0_2 = arith.constant 0 : index
    %1 = vector.load %arg2[%c0_1, %c0_2] : memref<784x10xf32, #tpu.memory_space<vmem>>, vector<784x10xf32>
    %cst = arith.constant dense<0.000000e+00> : vector<16x10xf32>
    %2 = tpu.matmul %0, %1, %cst {dimension_numbers = #tpu.dot_dimension_numbers<[1], [0], [0], [1], [0, 0, 1, 1], [], []>} : vector<16x784xf32>, vector<784x10xf32>, vector<16x10xf32> -> vector<16x10xf32>
    %c0_3 = arith.constant 0 : index
    %c0_4 = arith.constant 0 : index
    %3 = vector.load %arg3[%c0_3, %c0_4] : memref<1x10xf32, #tpu.memory_space<vmem>>, vector<1x10xf32>
    %4 = vector.broadcast %3 : vector<1x10xf32> to vector<16x10xf32>
    %5 = arith.addf %2, %4 : vector<16x10xf32>
    %c0_5 = arith.constant 0 : index
    %c0_6 = arith.constant 0 : index
    %6 = vector.load %arg4[%c0_5, %c0_6] : memref<16x10xf32, #tpu.memory_space<vmem>>, vector<16x10xf32>
    tpu.vector_store %arg4[%c0_5, %c0_6], %5 {strides = array<i32>} : memref<16x10xf32, #tpu.memory_space<vmem>>, vector<16x10xf32>,
    return
  }
  func.func @transform_0(%arg0: i32) -> (i32, i32) {
    %c0_i32 = arith.constant 0 : i32
    %c0_i32_0 = arith.constant 0 : i32
    return %arg0, %c0_i32 : i32, i32
  }
  func.func @transform_1(%arg0: i32) -> (i32, i32) {
    %c0_i32 = arith.constant 0 : i32
    %c0_i32_0 = arith.constant 0 : i32
    %c0_i32_1 = arith.constant 0 : i32
    return %c0_i32, %c0_i32_0 : i32, i32
  }
  func.func @transform_2(%arg0: i32) -> (i32, i32) {
    %c0_i32 = arith.constant 0 : i32
    %c0_i32_0 = arith.constant 0 : i32
    %c0_i32_1 = arith.constant 0 : i32
    return %c0_i32, %c0_i32_0 : i32, i32
  }
  func.func @transform_3(%arg0: i32) -> (i32, i32) {
    %c0_i32 = arith.constant 0 : i32
    %c0_i32_0 = arith.constant 0 : i32
    return %arg0, %c0_i32 : i32, i32
  }
}

</mosaic_0001>

<llo_original>
// kernel: tpu_custom_call.1
$region0: #{tpu_custom_call.1}
  #allocation0 [shape = 'u32[]', space=smem, size = 0x4, offset = 0x4, fixed_abs, tag = 'smem constant byte address 0x4 - core index']
  #allocation1 [shape = 'u32[72,128]{1,0:T(1,128)}', space=vmem, size = 0x9000, scoped, tag = 'internal scratch']
  %s0 = inlined_call_operand.vmem [shape: f32[32,784], index: 0, kind: input, shape index: {}]
  %s1 = inlined_call_operand.vmem [shape: f32[784,10], index: 1, kind: input, shape index: {}]
  %s2 = inlined_call_operand.vmem [shape: f32[1,10], index: 2, kind: input, shape index: {}]
  %s3 = inlined_call_operand.vmem [shape: f32[32,10], index: 3, kind: output, shape index: {}]
  %s4 = sld [smem:[#allocation0]]
  $region45: #{tpu_custom_call.1} parent=0
    _
  %s6 = ssub.s32 1, %s4
  %s7 = scalar_select 0, %s6, %s4
  loop: start=0, step=1, limit=4
  $region2: #{tpu_custom_call.1} parent=0 // loop_pre_header
    _
  $region3: #{tpu_custom_call.1} parent=0 // loop_header
    %s9 = sphi 0, %s13
    %p10 = scmp.ge.s32.totalorder %s9, 4
    %s19 = sphi 0, %s21
    %s22 = sphi 0, %s19
    %s23 = sphi 0, %s22
    %s39 = sphi 0, %s23
    %s43 = sphi 0, %s43
    %s45 = sphi 0, %s43
    %s46 = sphi 0, %s45
    %s60 = sphi 0, %s46
    %s64 = sphi 0, %s64
    %s66 = sphi 0, %s64
    %s67 = sphi 0, %s66
    %s81 = sphi 0, %s67
    %s87 = sphi 0, %s89
    %s90 = sphi 0, %s87
    %s91 = sphi 0, %s90
    %s107 = sphi 0, %s91
  $region4: #{tpu_custom_call.1} parent=0 // loop_header_branch
    %12 = sbr.rel (%p10) target = $region8
  $region5: #{tpu_custom_call.1} parent=0 // loop_body
    %s14 = ssub.s32 %s9, 1
    %s15 = ssub.s32 %s9, 2
    %s16 = sadd.s32 %s9, 1
    %s17 = ssub.s32 %s9, %s16
    %p18 = scmp.eq.s32.totalorder %s17, 0
    %s20 = sadd.s32 %s19, 1
    %s21 = scalar_select %p18, %s19, %s20
    %p24 = pneg %p18
    %p25 = scmp.eq.s32.totalorder %s9, 1
    %p26 = por %p24, %p25
    %p27 = scmp.ne.s32.totalorder %s19, %s22
    %p28 = scmp.eq.s32.totalorder %s9, 0
    %p29 = por %p27, %p28
    %p30 = scmp.ne.s32.totalorder %s19, %s22
    %p31 = scmp.eq.s32.totalorder %s14, 1
    %p32 = por %p30, %p31
    %p33 = scmp.ne.s32.totalorder %s22, %s23
    %p34 = scmp.eq.s32.totalorder %s14, 0
    %p35 = por %p33, %p34
    %p36 = scmp.ne.s32.totalorder %s22, %s23
    %p37 = scmp.eq.s32.totalorder %s15, 1
    %p38 = por %p36, %p37
    %p40 = scmp.ne.s32.totalorder %s23, %s39
    %p41 = scmp.eq.s32.totalorder %s15, 0
    %p42 = por %p40, %p41
    %s44 = sadd.s32 %s43, 1
    %p47 = scmp.eq.s32.totalorder %s9, 1
    %p48 = scmp.ne.s32.totalorder %s43, %s45
    %p49 = scmp.eq.s32.totalorder %s9, 0
    %p50 = por %p48, %p49
    %p51 = scmp.ne.s32.totalorder %s43, %s45
    %p52 = scmp.eq.s32.totalorder %s14, 1
    %p53 = por %p51, %p52
    %p54 = scmp.ne.s32.totalorder %s45, %s46
    %p55 = scmp.eq.s32.totalorder %s14, 0
    %p56 = por %p54, %p55
    %p57 = scmp.ne.s32.totalorder %s45, %s46
    %p58 = scmp.eq.s32.totalorder %s15, 1
    %p59 = por %p57, %p58
    %p61 = scmp.ne.s32.totalorder %s46, %s60
    %p62 = scmp.eq.s32.totalorder %s15, 0
    %p63 = por %p61, %p62
    %s65 = sadd.s32 %s64, 1
    %p68 = scmp.eq.s32.totalorder %s9, 1
    %p69 = scmp.ne.s32.totalorder %s64, %s66
    %p70 = scmp.eq.s32.totalorder %s9, 0
    %p71 = por %p69, %p70
    %p72 = scmp.ne.s32.totalorder %s64, %s66
    %p73 = scmp.eq.s32.totalorder %s14, 1
    %p74 = por %p72, %p73
    %p75 = scmp.ne.s32.totalorder %s66, %s67
    %p76 = scmp.eq.s32.totalorder %s14, 0
    %p77 = por %p75, %p76
    %p78 = scmp.ne.s32.totalorder %s66, %s67
    %p79 = scmp.eq.s32.totalorder %s15, 1
    %p80 = por %p78, %p79
    %p82 = scmp.ne.s32.totalorder %s67, %s81
    %p83 = scmp.eq.s32.totalorder %s15, 0
    %p84 = por %p82, %p83
    %s85 = ssub.s32 %s9, %s16
    %p86 = scmp.eq.s32.totalorder %s85, 0
    %s88 = sadd.s32 %s87, 1
    %s89 = scalar_select %p86, %s87, %s88
    %p92 = pneg %p86
    %p93 = scmp.eq.s32.totalorder %s9, 1
    %p94 = por %p92, %p93
    %p95 = scmp.ne.s32.totalorder %s87, %s90
    %p96 = scmp.eq.s32.totalorder %s9, 0
    %p97 = por %p95, %p96
    %p98 = scmp.ne.s32.totalorder %s87, %s90
    %p99 = scmp.eq.s32.totalorder %s14, 1
    %p100 = por %p98, %p99
    %p101 = scmp.ne.s32.totalorder %s90, %s91
    %p102 = scmp.eq.s32.totalorder %s14, 0
    %p103 = por %p101, %p102
    %p104 = scmp.ne.s32.totalorder %s90, %s91
    %p105 = scmp.eq.s32.totalorder %s15, 1
    %p106 = por %p104, %p105
    %p108 = scmp.ne.s32.totalorder %s91, %s107
    %p109 = scmp.eq.s32.totalorder %s15, 0
    %p110 = por %p108, %p109
    %p111 = scmp.le.s32.totalorder 1, %s9
    %p112 = scmp.lt.s32.totalorder %s9, 3
    %p113 = pnand %p111, %p112
    %p114 = pneg %p113
    // Predicated region
    $region9: #{tpu_custom_call.1} parent=5 // pred_check
      _
    $region10: #{tpu_custom_call.1} parent=5 // pred_check_branch
      %116 = sbr.rel (%p113) target = $region12
    $region11: #{tpu_custom_call.1} parent=5 // pred_region
      %s117 = ssub.s32 %s9, 1
      // Predicated region
      $region13: #{tpu_custom_call.1} parent=11 // pred_check
        %p118 = pneg %p56
      $region14: #{tpu_custom_call.1} parent=11 // pred_check_branch
        %120 = sbr.rel (%p118) target = $region16
      $region15: #{tpu_custom_call.1} parent=11 // pred_region
        _
      $region16: #{tpu_custom_call.1} parent=11 // pred_fallthru
        _
      // Predicated region
      $region17: #{tpu_custom_call.1} parent=11 // pred_check
        %p121 = pneg %p77
      $region18: #{tpu_custom_call.1} parent=11 // pred_check_branch
        %123 = sbr.rel (%p121) target = $region20
      $region19: #{tpu_custom_call.1} parent=11 // pred_region
        _
      $region20: #{tpu_custom_call.1} parent=11 // pred_fallthru
        _
    $region12: #{tpu_custom_call.1} parent=5 // pred_fallthru
      _
    %p124 = scmp.lt.s32.totalorder %s9, 2
    // Predicated region
    $region21: #{tpu_custom_call.1} parent=5 // pred_check
      %p125 = pneg %p124
    $region22: #{tpu_custom_call.1} parent=5 // pred_check_branch
      %127 = sbr.rel (%p125) target = $region24
    $region23: #{tpu_custom_call.1} parent=5 // pred_region
      // Predicated region
      $region25: #{tpu_custom_call.1} parent=23 // pred_check
        %p128 = pneg %p29
      $region26: #{tpu_custom_call.1} parent=23 // pred_check_branch
        %130 = sbr.rel (%p128) target = $region28
      $region27: #{tpu_custom_call.1} parent=23 // pred_region
        %s131 = smul.u32 2, %s9
        %p132 = scmp.lt.s32.totalorder %s131, 3
        %s133 = scalar_select %p132, %s131, 3
        %s134 = smul.addr %s133, 7
        %s135 = smul.addr %s134, 8
        %s136 = scalar_lea.vmem %s0, %s135
        %s137 = smul.u32 2, %s9
      $region28: #{tpu_custom_call.1} parent=23 // pred_fallthru
        _
    $region24: #{tpu_custom_call.1} parent=5 // pred_fallthru
      _
    %p138 = scmp.le.s32.totalorder 1, %s9
    %p139 = scmp.lt.s32.totalorder %s9, 3
    %p140 = pnand %p138, %p139
    %p141 = pneg %p140
    // Predicated region
    $region29: #{tpu_custom_call.1} parent=5 // pred_check
      _
    $region30: #{tpu_custom_call.1} parent=5 // pred_check_branch
      %143 = sbr.rel (%p140) target = $region32
    $region31: #{tpu_custom_call.1} parent=5 // pred_region
      %s144 = ssub.s32 %s9, 1
      %s145 = smul.u32 2, %s14
      %p146 = scmp.lt.s32.totalorder %s145, 3
      %s147 = scalar_select %p146, %s145, 3
      %s148 = smul.addr %s147, 7
      %s149 = smul.addr %s148, 8
      %s150 = scalar_lea.vmem %s0, %s149
      %p151 = pneg %p35
      %p152 = pneg %p32
      %p153 = pneg %p56
      %p154 = pneg %p53
      %p155 = pneg %p77
      %p156 = pneg %p74
      %p157 = pneg %p103
      %p158 = pneg %p100
      %s159 = smul.u32 2, %s14
      %p160 = scmp.lt.s32.totalorder %s159, 3
      %s161 = scalar_select %p160, %s159, 3
      %s162 = smul.addr %s161, 8
      %s163 = scalar_lea.vmem %s3, %s162
      %s164 = smul.u32 2, %s14
      %p165 = scmp.lt.s32.totalorder %s164, 3
      %s166 = scalar_select %p165, %s164, 3
      %s167 = smul.addr %s166, 7
      %s168 = smul.addr %s167, 8
      %s169 = scalar_lea.vmem %s0, %s168
      %s170 = smul.u32 2, %s14
      %s171 = smul.u32 2, %s14
      %p172 = scmp.lt.s32.totalorder %s171, 3
      %s173 = scalar_select %p172, %s171, 3
      %s174 = smul.addr %s173, 8
      %s175 = scalar_lea.vmem %s3, %s174
      %s176 = smul.u32 2, %s14
      %v177 = vld [vmem:[%s169] sm:$0xff]
      %v178 = vld [vmem:[%s169 + $0x8] sm:$0xff]
      %v179 = vld [vmem:[%s169 + $0x10] sm:$0xff]
      %v180 = vld [vmem:[%s169 + $0x18] sm:$0xff]
      %v181 = vld [vmem:[%s169 + $0x20] sm:$0xff]
      %v182 = vld [vmem:[%s169 + $0x28] sm:$0xff]
      %v183 = vld [vmem:[%s169 + $0x30] sm:$0xff]
      %v184 = vld [vmem:[%s169 + $0x38] sm:$0xff]
      %v185 = vld [vmem:[%s169 + $0x40] sm:$0xff]
      %v186 = vld [vmem:[%s169 + $0x48] sm:$0xff]
      %v187 = vld [vmem:[%s169 + $0x50] sm:$0xff]
      %v188 = vld [vmem:[%s169 + $0x58] sm:$0xff]
      %v189 = vld [vmem:[%s169 + $0x60] sm:$0xff]
      %v190 = vld [vmem:[%s169 + $0x68] sm:$0xff]
      %v191 = vld [vmem:[%s1] sm:$0xff]
      %v192 = vld [vmem:[%s1 + $0x8] sm:$0xff]
      %v193 = vld [vmem:[%s1 + $0x10] sm:$0xff]
      %v194 = vld [vmem:[%s1 + $0x18] sm:$0xff]
      %v195 = vld [vmem:[%s1 + $0x20] sm:$0xff]
      %v196 = vld [vmem:[%s1 + $0x28] sm:$0xff]
      %v197 = vld [vmem:[%s1 + $0x30] sm:$0xff]
      %v198 = vld [vmem:[%s1 + $0x38] sm:$0xff]
      %v199 = vld [vmem:[%s1 + $0x40] sm:$0xff]
      %v200 = vld [vmem:[%s1 + $0x48] sm:$0xff]
      %v201 = vld [vmem:[%s1 + $0x50] sm:$0xff]
      %v202 = vld [vmem:[%s1 + $0x58] sm:$0xff]
      %v203 = vld [vmem:[%s1 + $0x60] sm:$0xff]
      %v204 = vld [vmem:[%s1 + $0x68] sm:$0xff]
      %v205 = vld [vmem:[%s1 + $0x70] sm:$0xff]
      %v206 = vld [vmem:[%s1 + $0x78] sm:$0xff]
      %v207 = vld [vmem:[%s1 + $0x80] sm:$0xff]
      %v208 = vld [vmem:[%s1 + $0x88] sm:$0xff]
      %v209 = vld [vmem:[%s1 + $0x90] sm:$0xff]
      %v210 = vld [vmem:[%s1 + $0x98] sm:$0xff]
      %v211 = vld [vmem:[%s1 + $0xa0] sm:$0xff]
      %v212 = vld [vmem:[%s1 + $0xa8] sm:$0xff]
      %v213 = vld [vmem:[%s1 + $0xb0] sm:$0xff]
      %v214 = vld [vmem:[%s1 + $0xb8] sm:$0xff]
      %v215 = vld [vmem:[%s1 + $0xc0] sm:$0xff]
      %v216 = vld [vmem:[%s1 + $0xc8] sm:$0xff]
      %v217 = vld [vmem:[%s1 + $0xd0] sm:$0xff]
      %v218 = vld [vmem:[%s1 + $0xd8] sm:$0xff]
      %v219 = vld [vmem:[%s1 + $0xe0] sm:$0xff]
      %v220 = vld [vmem:[%s1 + $0xe8] sm:$0xff]
      %v221 = vld [vmem:[%s1 + $0xf0] sm:$0xff]
      %v222 = vld [vmem:[%s1 + $0xf8] sm:$0xff]
      %v223 = vld [vmem:[%s1 + $0x100] sm:$0xff]
      %v224 = vld [vmem:[%s1 + $0x108] sm:$0xff]
      %v225 = vld [vmem:[%s1 + $0x110] sm:$0xff]
      %v226 = vld [vmem:[%s1 + $0x118] sm:$0xff]
      %v227 = vld [vmem:[%s1 + $0x120] sm:$0xff]
      %v228 = vld [vmem:[%s1 + $0x128] sm:$0xff]
      %v229 = vld [vmem:[%s1 + $0x130] sm:$0xff]
      %v230 = vld [vmem:[%s1 + $0x138] sm:$0xff]
      %v231 = vld [vmem:[%s1 + $0x140] sm:$0xff]
      %v232 = vld [vmem:[%s1 + $0x148] sm:$0xff]
      %v233 = vld [vmem:[%s1 + $0x150] sm:$0xff]
      %v234 = vld [vmem:[%s1 + $0x158] sm:$0xff]
      %v235 = vld [vmem:[%s1 + $0x160] sm:$0xff]
      %v236 = vld [vmem:[%s1 + $0x168] sm:$0xff]
      %v237 = vld [vmem:[%s1 + $0x170] sm:$0xff]
      %v238 = vld [vmem:[%s1 + $0x178] sm:$0xff]
      %v239 = vld [vmem:[%s1 + $0x180] sm:$0xff]
      %v240 = vld [vmem:[%s1 + $0x188] sm:$0xff]
      %v241 = vld [vmem:[%s1 + $0x190] sm:$0xff]
      %v242 = vld [vmem:[%s1 + $0x198] sm:$0xff]
      %v243 = vld [vmem:[%s1 + $0x1a0] sm:$0xff]
      %v244 = vld [vmem:[%s1 + $0x1a8] sm:$0xff]
      %v245 = vld [vmem:[%s1 + $0x1b0] sm:$0xff]
      %v246 = vld [vmem:[%s1 + $0x1b8] sm:$0xff]
      %v247 = vld [vmem:[%s1 + $0x1c0] sm:$0xff]
      %v248 = vld [vmem:[%s1 + $0x1c8] sm:$0xff]
      %v249 = vld [vmem:[%s1 + $0x1d0] sm:$0xff]
      %v250 = vld [vmem:[%s1 + $0x1d8] sm:$0xff]
      %v251 = vld [vmem:[%s1 + $0x1e0] sm:$0xff]
      %v252 = vld [vmem:[%s1 + $0x1e8] sm:$0xff]
      %v253 = vld [vmem:[%s1 + $0x1f0] sm:$0xff]
      %v254 = vld [vmem:[%s1 + $0x1f8] sm:$0xff]
      %v255 = vld [vmem:[%s1 + $0x200] sm:$0xff]
      %v256 = vld [vmem:[%s1 + $0x208] sm:$0xff]
      %v257 = vld [vmem:[%s1 + $0x210] sm:$0xff]
      %v258 = vld [vmem:[%s1 + $0x218] sm:$0xff]
      %v259 = vld [vmem:[%s1 + $0x220] sm:$0xff]
      %v260 = vld [vmem:[%s1 + $0x228] sm:$0xff]
      %v261 = vld [vmem:[%s1 + $0x230] sm:$0xff]
      %v262 = vld [vmem:[%s1 + $0x238] sm:$0xff]
      %v263 = vld [vmem:[%s1 + $0x240] sm:$0xff]
      %v264 = vld [vmem:[%s1 + $0x248] sm:$0xff]
      %v265 = vld [vmem:[%s1 + $0x250] sm:$0xff]
      %v266 = vld [vmem:[%s1 + $0x258] sm:$0xff]
      %v267 = vld [vmem:[%s1 + $0x260] sm:$0xff]
      %v268 = vld [vmem:[%s1 + $0x268] sm:$0xff]
      %v269 = vld [vmem:[%s1 + $0x270] sm:$0xff]
      %v270 = vld [vmem:[%s1 + $0x278] sm:$0xff]
      %v271 = vld [vmem:[%s1 + $0x280] sm:$0xff]
      %v272 = vld [vmem:[%s1 + $0x288] sm:$0xff]
      %v273 = vld [vmem:[%s1 + $0x290] sm:$0xff]
      %v274 = vld [vmem:[%s1 + $0x298] sm:$0xff]
      %v275 = vld [vmem:[%s1 + $0x2a0] sm:$0xff]
      %v276 = vld [vmem:[%s1 + $0x2a8] sm:$0xff]
      %v277 = vld [vmem:[%s1 + $0x2b0] sm:$0xff]
      %v278 = vld [vmem:[%s1 + $0x2b8] sm:$0xff]
      %v279 = vld [vmem:[%s1 + $0x2c0] sm:$0xff]
      %v280 = vld [vmem:[%s1 + $0x2c8] sm:$0xff]
      %v281 = vld [vmem:[%s1 + $0x2d0] sm:$0xff]
      %v282 = vld [vmem:[%s1 + $0x2d8] sm:$0xff]
      %v283 = vld [vmem:[%s1 + $0x2e0] sm:$0xff]
      %v284 = vld [vmem:[%s1 + $0x2e8] sm:$0xff]
      %v285 = vld [vmem:[%s1 + $0x2f0] sm:$0xff]
      %v286 = vld [vmem:[%s1 + $0x2f8] sm:$0xff]
      %v287 = vld [vmem:[%s1 + $0x300] sm:$0xff]
      %v288 = vld [vmem:[%s1 + $0x308] sm:$0xff]
      %v289 = vld [vmem:[%s2] sm:$0x1]
      %v291 = vperm.slane %v289, 0
      %vm293 = vcmask 130048
      %v295 = vsel %vm293, %v183, 0
      %v298 = vsel %vm293, %v190, 0
      %300 = vmatpush.msra.mxu0 %v206
      %301 = vmatpush.msra.mxu0 %v205
      %302 = vmatpush.msra.mxu0 %v204
      %303 = vmatpush.msra.mxu0 %v203
      %304 = vmatpush.msra.mxu0 %v202
      %305 = vmatpush.msra.mxu0 %v201
      %306 = vmatpush.msra.mxu0 %v200
      %307 = vmatpush.msra.mxu0 %v199
      %308 = vmatpush.msra.mxu0 %v198
      %309 = vmatpush.msra.mxu0 %v197
      %310 = vmatpush.msra.mxu0 %v196
      %311 = vmatpush.msra.mxu0 %v195
      %312 = vmatpush.msra.mxu0 %v194
      %313 = vmatpush.msra.mxu0 %v193
      %314 = vmatpush.msra.mxu0 %v192
      %315 = vmatpush.msra.mxu0 %v191
      %316 = vmatmul.f32.gmra.mxu0 %v177
      %v317 = vpop.f32.mrf.mxu0
      %v318 = vadd.f32 %v291, %v317
      %319 = vmatmul.f32.gmra.mxu0 %v184
      %v320 = vpop.f32.mrf.mxu0
      %v321 = vadd.f32 %v291, %v320
      %322 = vdwg.mxu0
      %323 = vmatpush.msra.mxu0 %v222
      %324 = vmatpush.msra.mxu0 %v221
      %325 = vmatpush.msra.mxu0 %v220
      %326 = vmatpush.msra.mxu0 %v219
      %327 = vmatpush.msra.mxu0 %v218
      %328 = vmatpush.msra.mxu0 %v217
      %329 = vmatpush.msra.mxu0 %v216
      %330 = vmatpush.msra.mxu0 %v215
      %331 = vmatpush.msra.mxu0 %v214
      %332 = vmatpush.msra.mxu0 %v213
      %333 = vmatpush.msra.mxu0 %v212
      %334 = vmatpush.msra.mxu0 %v211
      %335 = vmatpush.msra.mxu0 %v210
      %336 = vmatpush.msra.mxu0 %v209
      %337 = vmatpush.msra.mxu0 %v208
      %338 = vmatpush.msra.mxu0 %v207
      %339 = vmatmul.f32.gmra.mxu0 %v178
      %v340 = vpop.f32.mrf.mxu0
      %v341 = vadd.f32 %v318, %v340
      %342 = vmatmul.f32.gmra.mxu0 %v185
      %v343 = vpop.f32.mrf.mxu0
      %v344 = vadd.f32 %v321, %v343
      %345 = vdwg.mxu0
      %346 = vmatpush.msra.mxu0 %v238
      %347 = vmatpush.msra.mxu0 %v237
      %348 = vmatpush.msra.mxu0 %v236
      %349 = vmatpush.msra.mxu0 %v235
      %350 = vmatpush.msra.mxu0 %v234
      %351 = vmatpush.msra.mxu0 %v233
      %352 = vmatpush.msra.mxu0 %v232
      %353 = vmatpush.msra.mxu0 %v231
      %354 = vmatpush.msra.mxu0 %v230
      %355 = vmatpush.msra.mxu0 %v229
      %356 = vmatpush.msra.mxu0 %v228
      %357 = vmatpush.msra.mxu0 %v227
      %358 = vmatpush.msra.mxu0 %v226
      %359 = vmatpush.msra.mxu0 %v225
      %360 = vmatpush.msra.mxu0 %v224
      %361 = vmatpush.msra.mxu0 %v223
      %362 = vmatmul.f32.gmra.mxu0 %v179
      %v363 = vpop.f32.mrf.mxu0
      %v364 = vadd.f32 %v341, %v363
      %365 = vmatmul.f32.gmra.mxu0 %v186
      %v366 = vpop.f32.mrf.mxu0
      %v367 = vadd.f32 %v344, %v366
      %368 = vdwg.mxu0
      %369 = vmatpush.msra.mxu0 %v254
      %370 = vmatpush.msra.mxu0 %v253
      %371 = vmatpush.msra.mxu0 %v252
      %372 = vmatpush.msra.mxu0 %v251
      %373 = vmatpush.msra.mxu0 %v250
      %374 = vmatpush.msra.mxu0 %v249
      %375 = vmatpush.msra.mxu0 %v248
      %376 = vmatpush.msra.mxu0 %v247
      %377 = vmatpush.msra.mxu0 %v246
      %378 = vmatpush.msra.mxu0 %v245
      %379 = vmatpush.msra.mxu0 %v244
      %380 = vmatpush.msra.mxu0 %v243
      %381 = vmatpush.msra.mxu0 %v242
      %382 = vmatpush.msra.mxu0 %v241
      %383 = vmatpush.msra.mxu0 %v240
      %384 = vmatpush.msra.mxu0 %v239
      %385 = vmatmul.f32.gmra.mxu0 %v180
      %v386 = vpop.f32.mrf.mxu0
      %v387 = vadd.f32 %v364, %v386
      %388 = vmatmul.f32.gmra.mxu0 %v187
      %v389 = vpop.f32.mrf.mxu0
      %v390 = vadd.f32 %v367, %v389
      %391 = vdwg.mxu0
      %392 = vmatpush.msra.mxu0 %v270
      %393 = vmatpush.msra.mxu0 %v269
      %394 = vmatpush.msra.mxu0 %v268
      %395 = vmatpush.msra.mxu0 %v267
      %396 = vmatpush.msra.mxu0 %v266
      %397 = vmatpush.msra.mxu0 %v265
      %398 = vmatpush.msra.mxu0 %v264
      %399 = vmatpush.msra.mxu0 %v263
      %400 = vmatpush.msra.mxu0 %v262
      %401 = vmatpush.msra.mxu0 %v261
      %402 = vmatpush.msra.mxu0 %v260
      %403 = vmatpush.msra.mxu0 %v259
      %404 = vmatpush.msra.mxu0 %v258
      %405 = vmatpush.msra.mxu0 %v257
      %406 = vmatpush.msra.mxu0 %v256
      %407 = vmatpush.msra.mxu0 %v255
      %408 = vmatmul.f32.gmra.mxu0 %v181
      %v409 = vpop.f32.mrf.mxu0
      %v410 = vadd.f32 %v387, %v409
      %411 = vmatmul.f32.gmra.mxu0 %v188
      %v412 = vpop.f32.mrf.mxu0
      %v413 = vadd.f32 %v390, %v412
      %414 = vdwg.mxu0
      %415 = vmatpush.msra.mxu0 %v286
      %416 = vmatpush.msra.mxu0 %v285
      %417 = vmatpush.msra.mxu0 %v284
      %418 = vmatpush.msra.mxu0 %v283
      %419 = vmatpush.msra.mxu0 %v282
      %420 = vmatpush.msra.mxu0 %v281
      %421 = vmatpush.msra.mxu0 %v280
      %422 = vmatpush.msra.mxu0 %v279
      %423 = vmatpush.msra.mxu0 %v278
      %424 = vmatpush.msra.mxu0 %v277
      %425 = vmatpush.msra.mxu0 %v276
      %426 = vmatpush.msra.mxu0 %v275
      %427 = vmatpush.msra.mxu0 %v274
      %428 = vmatpush.msra.mxu0 %v273
      %429 = vmatpush.msra.mxu0 %v272
      %430 = vmatpush.msra.mxu0 %v271
      %431 = vmatmul.f32.gmra.mxu0 %v182
      %v432 = vpop.f32.mrf.mxu0
      %v433 = vadd.f32 %v410, %v432
      %434 = vmatmul.f32.gmra.mxu0 %v189
      %v435 = vpop.f32.mrf.mxu0
      %v436 = vadd.f32 %v413, %v435
      %437 = vdwg.mxu0
      %438 = vmatpush.msra.mxu0 0.0
      %439 = vmatpush.msra.mxu0 0.0
      %440 = vmatpush.msra.mxu0 0.0
      %441 = vmatpush.msra.mxu0 0.0
      %442 = vmatpush.msra.mxu0 0.0
      %443 = vmatpush.msra.mxu0 0.0
      %444 = vmatpush.msra.mxu0 0.0
      %445 = vmatpush.msra.mxu0 0.0
      %446 = vmatpush.msra.mxu0 0.0
      %447 = vmatpush.msra.mxu0 0.0
      %448 = vmatpush.msra.mxu0 0.0
      %449 = vmatpush.msra.mxu0 0.0
      %450 = vmatpush.msra.mxu0 0.0
      %451 = vmatpush.msra.mxu0 0.0
      %452 = vmatpush.msra.mxu0 %v288
      %453 = vmatpush.msra.mxu0 %v287
      %454 = vmatmul.f32.gmra.mxu0 %v295
      %v455 = vpop.f32.mrf.mxu0
      %v456 = vadd.f32 %v433, %v455
      %457 = vmatmul.f32.gmra.mxu0 %v298
      %v458 = vpop.f32.mrf.mxu0
      %v459 = vadd.f32 %v436, %v458
      %460 = vdwg.mxu0
      %vm461 = vcmask 80896
      %462 = vst.msk [vmem:[%s175] sm:$0xff] %vm461, %v456
      %463 = vst.msk [vmem:[%s175 + $0x8] sm:$0xff] %vm461, %v459
      %s464 = smul.u32 2, %s14
      %p465 = scmp.lt.s32.totalorder %s464, 3
      %s466 = scalar_select %p465, %s464, 3
      %s467 = smul.addr %s466, 8
      %s468 = scalar_lea.vmem %s3, %s467
      // Predicated region
      $region33: #{tpu_custom_call.1} parent=31 // pred_check
        %p469 = pneg %p100
      $region34: #{tpu_custom_call.1} parent=31 // pred_check_branch
        %471 = sbr.rel (%p469) target = $region36
      $region35: #{tpu_custom_call.1} parent=31 // pred_region
        %s472 = smul.u32 2, %s14
      $region36: #{tpu_custom_call.1} parent=31 // pred_fallthru
        _
    $region32: #{tpu_custom_call.1} parent=5 // pred_fallthru
      _
    %p473 = scmp.le.s32.totalorder 2, %s9
    // Predicated region
    $region37: #{tpu_custom_call.1} parent=5 // pred_check
      %p474 = pneg %p473
    $region38: #{tpu_custom_call.1} parent=5 // pred_check_branch
      %476 = sbr.rel (%p474) target = $region40
    $region39: #{tpu_custom_call.1} parent=5 // pred_region
      %s477 = ssub.s32 %s9, 2
      // Predicated region
      $region41: #{tpu_custom_call.1} parent=39 // pred_check
        %p478 = pneg %p106
      $region42: #{tpu_custom_call.1} parent=39 // pred_check_branch
        %480 = sbr.rel (%p478) target = $region44
      $region43: #{tpu_custom_call.1} parent=39 // pred_region
        %s481 = smul.u32 2, %s15
        %p482 = scmp.lt.s32.totalorder %s481, 3
        %s483 = scalar_select %p482, %s481, 3
        %s484 = smul.addr %s483, 8
        %s485 = scalar_lea.vmem %s3, %s484
      $region44: #{tpu_custom_call.1} parent=39 // pred_fallthru
        _
    $region40: #{tpu_custom_call.1} parent=5 // pred_fallthru
      _
  $region6: #{tpu_custom_call.1} parent=0 // loop_footer
    %s13 = sadd.s32 1, %s9
  $region7: #{tpu_custom_call.1} parent=0 // loop_footer_branch
    %8 = sbr.rel target = $region3
  $region8: #{tpu_custom_call.1} parent=0 // loop_exit
    _

</llo_original>
